<compile_context>
chip_gen: v7x
topology: tpu7x:2x2x1
jax: 0.10.0
libtpu: 0.0.40
codegen_flags: <defaults>
</compile_context>

<pallas_src>
import functools
import math

import numpy as np

import jax
import jax.numpy as jnp
from jax.experimental import pallas as pl
from jax.experimental.pallas import tpu as pltpu


# ----------------------------------------------------------------------------
# Host-side constant construction (compile-time; never touches the TPU).
# ----------------------------------------------------------------------------
def make_gaussian_weight_2d(channels, kernel_size, sigma, dim=2):
    """Replicates GaussianSmoothing.__init__ weight construction (dim=2)."""
    ks = [kernel_size] * dim
    sig = [float(sigma)] * dim
    grids = np.meshgrid(*[np.arange(s, dtype=np.float32) for s in ks], indexing="ij")
    kernel = np.ones((), np.float32)
    for size, std, mgrid in zip(ks, sig, grids):
        mean = (size - 1) / 2.0
        kernel = kernel * (1.0 / (std * math.sqrt(2.0 * math.pi))) * np.exp(
            -(((mgrid - mean) / std) ** 2) / 2.0
        )
    kernel = kernel / kernel.sum()
    weight = np.broadcast_to(kernel, (channels,) + kernel.shape)
    return jnp.asarray(weight, dtype=jnp.float32)


def _gaussian_taps_1d(kernel_size, sigma):
    """Normalised 1-D Gaussian taps as Python floats (compile-time constants).

    The module's 2-D kernel is outer(g, g) / sum(outer(g, g)) == g_n (x) g_n
    with g_n = g / sum(g), so applying g_n along H and then along W is exact
    (the 1/(sigma*sqrt(2*pi)) factor cancels in the normalisation).
    """
    coords = np.arange(kernel_size, dtype=np.float64)
    mean = (kernel_size - 1) / 2.0
    g = np.exp(-0.5 * ((coords - mean) / float(sigma)) ** 2)
    g = g / g.sum()
    return tuple(float(v) for v in g)


def _weighted_wrap_masks(taps, H, W):
    """(K, H*W) f32 constants: taps[j] where the j-th horizontal lane shift
    stays inside its own image row, 0.0 where it would wrap into the
    neighbouring row (or into the halo).  Built on the host; the per-tap
    scalar multiply is folded in so the hot loop is a single mul+add per tap.
    """
    K = len(taps)
    pad = K // 2
    w_idx = np.arange(H * W) % W
    out = np.zeros((K, H * W), np.float32)
    for j, t in enumerate(taps):
        valid = (w_idx + j - pad >= 0) & (w_idx + j - pad < W)
        out[j] = np.where(valid, np.float32(t), np.float32(0.0))
    return jnp.asarray(out)


def _choose_grid(num_planes, plane_elems, itemsize, target_block_bytes=4 << 20):
    """Pick planes-per-step (PB) and grid length (G = num_planes / PB).

    Big blocks amortise per-step overhead, but the slab is capped (~4 MiB)
    so double-buffered input + output + scratch stay far below the v7x 32 MiB
    scoped-VMEM default, and we keep >=2 grid steps whenever possible so the
    "parallel" axis can be sharded across v7x's two TensorCores (harmless on
    the single-TC v5e/v6e).
    """
    max_pb = max(1, target_block_bytes // (plane_elems * itemsize))
    pb = min(num_planes, max_pb)
    if num_planes > 1:
        pb = min(pb, max(1, num_planes // 2))   # keep >=2 grid steps
    while num_planes % pb:
        pb -= 1
    return pb, num_planes // pb


# ----------------------------------------------------------------------------
# Kernel body.
# ----------------------------------------------------------------------------
def _gauss_sep_kernel(wmask_ref, x_ref, o_ref, vscr, hscr, *, taps, H, W, pad):
    """Separable depthwise Gaussian blur over a (PB, H*W) slab of planes.

    Each sublane row is one (n, c) image plane; the lane dim holds that
    plane's H*W pixels flattened row-major (lane-dense).  The zero halo for
    the conv padding is materialised once per pass in VMEM scratch, so every
    tap is a static lane-offset read -- no external jnp.pad, no K*K shifted
    loads, no SMEM tap reads, no per-channel indexing (taps are shared).
    """
    HW = H * W
    K = len(taps)

    # ---- vertical pass: zero halo of `pad` image rows (= pad*W lanes) ------
    vscr[...] = jnp.zeros(vscr.shape, vscr.dtype)
    vscr[:, pad * W:pad * W + HW] = x_ref[...].astype(jnp.float32)
    acc = taps[0] * vscr[:, 0:HW]
    for i in range(1, K):                      # unrolled; taps are constants
        acc = acc + taps[i] * vscr[:, i * W:i * W + HW]

    # ---- horizontal pass: zero halo of `pad` pixels; wmask = tap * validity
    # so a lane shift never blends pixels across image-row / halo boundaries -
    hscr[...] = jnp.zeros(hscr.shape, hscr.dtype)
    hscr[:, pad:pad + HW] = acc
    out = hscr[:, 0:HW] * wmask_ref[0:1, :]
    for j in range(1, K):
        out = out + hscr[:, j:j + HW] * wmask_ref[j:j + 1, :]

    o_ref[...] = out.astype(o_ref.dtype)


# ----------------------------------------------------------------------------
# Wrapper (mirrors GaussianSmoothing.forward for dim=2).
# ----------------------------------------------------------------------------
def gaussian_smoothing(x, channels, kernel_size, sigma):
    """Depthwise same-size Gaussian blur, matching GaussianSmoothing.forward."""
    N, C, H, W = x.shape
    assert C == channels, "channel count must match the module configuration"
    K = int(kernel_size)
    pad = K // 2
    assert K % 2 == 1, "same-size output requires an odd kernel_size"

    taps = _gaussian_taps_1d(K, sigma)          # compile-time constants
    wmask = _weighted_wrap_masks(taps, H, W)    # (K, H*W) host-built constants

    HW = H * W
    P = N * C
    PB, G = _choose_grid(P, HW, x.dtype.itemsize)

    # Free reshape (no HBM data movement): planes -> sublanes, pixels -> lanes.
    xr = x.reshape(G, PB, HW)

    kernel = functools.partial(_gauss_sep_kernel, taps=taps, H=H, W=W, pad=pad)
    out = pl.pallas_call(
        kernel,
        out_shape=jax.ShapeDtypeStruct((G, PB, HW), x.dtype),
        grid_spec=pltpu.PrefetchScalarGridSpec(
            num_scalar_prefetch=0,
            grid=(G,),
            in_specs=[
                # Tiny per-tap wrap masks (identical every step).
                pl.BlockSpec((K, HW), lambda g: (0, 0)),
                # One lane-dense slab of PB planes per grid step.
                pl.BlockSpec((None, PB, HW), lambda g: (g, 0, 0)),
            ],
            out_specs=pl.BlockSpec((None, PB, HW), lambda g: (g, 0, 0)),
            scratch_shapes=[
                pltpu.VMEM((PB, (H + 2 * pad) * W), jnp.float32),  # vertical halo
                pltpu.VMEM((PB, HW + 2 * pad), jnp.float32),       # horizontal halo
            ],
        ),
        compiler_params=pltpu.CompilerParams(
            dimension_semantics=("parallel",),
        ),
    )(wmask, xr)
    return out.reshape(N, C, H, W)


# ----------------------------------------------------------------------------
# Reference (same math as F.conv2d(input, weight, groups=C, padding=K//2)).
# ----------------------------------------------------------------------------
def _reference(x, channels, kernel_size, sigma):
    w2d = make_gaussian_weight_2d(channels, kernel_size, sigma)
    C = x.shape[1]
    K = w2d.shape[-1]
    w = w2d.reshape(C, 1, K, K)
    return jax.lax.conv_general_dilated(
        x, w,
        window_strides=(1, 1),
        padding=[(K // 2, K // 2), (K // 2, K // 2)],
        dimension_numbers=("NCHW", "OIHW", "NCHW"),
        feature_group_count=C,
        precision=jax.lax.Precision.HIGHEST,
    )


if __name__ == "__main__":
    # Module config: channels=4, kernel_size=3, sigma=1.0, dim=2
    channels, kernel_size, sigma = 4, 3, 1.0

    key = jax.random.PRNGKey(0)
    x = jax.random.normal(key, (2, channels, 16, 16), dtype=jnp.float32)

    out = jax.block_until_ready(gaussian_smoothing(x, channels, kernel_size, sigma))
    ref = jax.block_until_ready(_reference(x, channels, kernel_size, sigma))

    assert out.shape == ref.shape == x.shape
    max_err = float(jnp.max(jnp.abs(out - ref)))
    assert max_err < 1e-4, f"mismatch vs depthwise-conv reference: {max_err}"
    print("KERNEL_OK")
</pallas_src>

<mosaic_0001>
module attributes {stable_mosaic.version = 11 : i64} {
  func.func @_gauss_sep_kernel(%arg0: i32, %arg1: memref<3x256xf32, #tpu.memory_space<vmem>>, %arg2: memref<1x4x256xf32, #tpu.memory_space<vmem>>, %arg3: memref<1x4x256xf32, #tpu.memory_space<vmem>>, %arg4: memref<4x288xf32, #tpu.memory_space<vmem>>, %arg5: memref<4x258xf32, #tpu.memory_space<vmem>>) attributes {dimension_semantics = [#tpu.dimension_semantics<parallel>], iteration_bounds = array<i64: 2>, scalar_prefetch = 0 : i64, scratch_operands = 2 : i64, tpu.core_type = #tpu.core_type<tc>, window_params = [{pipeline_mode = #tpu.pipeline_mode<synchronous>, transform_indices = @transform_0, window_bounds = array<i64: 3, 256>}, {transform_indices = @transform_1, window_bounds = array<i64: 1, 4, 256>}, {transform_indices = @transform_2, window_bounds = array<i64: 1, 4, 256>}]} {
    %cst = arith.constant 0.000000e+00 : f32
    %0 = vector.broadcast %cst : f32 to vector<4x288xf32>
    %c0 = arith.constant 0 : index
    %c0_0 = arith.constant 0 : index
    %1 = vector.load %arg4[%c0, %c0_0] : memref<4x288xf32, #tpu.memory_space<vmem>>, vector<4x288xf32>
    tpu.vector_store %arg4[%c0, %c0_0], %0 {strides = array<i32>} : memref<4x288xf32, #tpu.memory_space<vmem>>, vector<4x288xf32>,
    %c0_1 = arith.constant 0 : index
    %c0_2 = arith.constant 0 : index
    %c0_3 = arith.constant 0 : index
    %2 = vector.load %arg2[%c0_1, %c0_2, %c0_3] : memref<1x4x256xf32, #tpu.memory_space<vmem>>, vector<1x4x256xf32>
    %3 = vector.shape_cast %2 : vector<1x4x256xf32> to vector<4x256xf32>
    %c0_4 = arith.constant 0 : index
    %c16 = arith.constant 16 : index
    %4 = vector.load %arg4[%c0_4, %c16] : memref<4x288xf32, #tpu.memory_space<vmem>>, vector<4x256xf32>
    tpu.vector_store %arg4[%c0_4, %c16], %3 {strides = array<i32>} : memref<4x288xf32, #tpu.memory_space<vmem>>, vector<4x256xf32>,
    %c0_5 = arith.constant 0 : index
    %c0_6 = arith.constant 0 : index
    %5 = vector.load %arg4[%c0_5, %c0_6] : memref<4x288xf32, #tpu.memory_space<vmem>>, vector<4x256xf32>
    %cst_7 = arith.constant 0.274068624 : f32
    %6 = vector.broadcast %cst_7 : f32 to vector<4x256xf32>
    %7 = arith.mulf %6, %5 : vector<4x256xf32>
    %c0_8 = arith.constant 0 : index
    %c16_9 = arith.constant 16 : index
    %8 = vector.load %arg4[%c0_8, %c16_9] : memref<4x288xf32, #tpu.memory_space<vmem>>, vector<4x256xf32>
    %cst_10 = arith.constant 0.451862752 : f32
    %9 = vector.broadcast %cst_10 : f32 to vector<4x256xf32>
    %10 = arith.mulf %9, %8 : vector<4x256xf32>
    %11 = arith.addf %7, %10 : vector<4x256xf32>
    %c0_11 = arith.constant 0 : index
    %c32 = arith.constant 32 : index
    %12 = vector.load %arg4[%c0_11, %c32] : memref<4x288xf32, #tpu.memory_space<vmem>>, vector<4x256xf32>
    %cst_12 = arith.constant 0.274068624 : f32
    %13 = vector.broadcast %cst_12 : f32 to vector<4x256xf32>
    %14 = arith.mulf %13, %12 : vector<4x256xf32>
    %15 = arith.addf %11, %14 : vector<4x256xf32>
    %cst_13 = arith.constant 0.000000e+00 : f32
    %16 = vector.broadcast %cst_13 : f32 to vector<4x258xf32>
    %c0_14 = arith.constant 0 : index
    %c0_15 = arith.constant 0 : index
    %17 = vector.load %arg5[%c0_14, %c0_15] : memref<4x258xf32, #tpu.memory_space<vmem>>, vector<4x258xf32>
    tpu.vector_store %arg5[%c0_14, %c0_15], %16 {strides = array<i32>} : memref<4x258xf32, #tpu.memory_space<vmem>>, vector<4x258xf32>,
    %c0_16 = arith.constant 0 : index
    %c1 = arith.constant 1 : index
    %18 = vector.load %arg5[%c0_16, %c1] : memref<4x258xf32, #tpu.memory_space<vmem>>, vector<4x256xf32>
    tpu.vector_store %arg5[%c0_16, %c1], %15 {strides = array<i32>} : memref<4x258xf32, #tpu.memory_space<vmem>>, vector<4x256xf32>,
    %c0_17 = arith.constant 0 : index
    %c0_18 = arith.constant 0 : index
    %19 = vector.load %arg5[%c0_17, %c0_18] : memref<4x258xf32, #tpu.memory_space<vmem>>, vector<4x256xf32>
    %c0_19 = arith.constant 0 : index
    %c0_20 = arith.constant 0 : index
    %20 = vector.load %arg1[%c0_19, %c0_20] : memref<3x256xf32, #tpu.memory_space<vmem>>, vector<1x256xf32>
    %21 = vector.broadcast %20 : vector<1x256xf32> to vector<4x256xf32>
    %22 = arith.mulf %19, %21 : vector<4x256xf32>
    %c0_21 = arith.constant 0 : index
    %c1_22 = arith.constant 1 : index
    %23 = vector.load %arg5[%c0_21, %c1_22] : memref<4x258xf32, #tpu.memory_space<vmem>>, vector<4x256xf32>
    %c1_23 = arith.constant 1 : index
    %c0_24 = arith.constant 0 : index
    %24 = vector.load %arg1[%c1_23, %c0_24] : memref<3x256xf32, #tpu.memory_space<vmem>>, vector<1x256xf32>
    %25 = vector.broadcast %24 : vector<1x256xf32> to vector<4x256xf32>
    %26 = arith.mulf %23, %25 : vector<4x256xf32>
    %27 = arith.addf %22, %26 : vector<4x256xf32>
    %c0_25 = arith.constant 0 : index
    %c2 = arith.constant 2 : index
    %28 = vector.load %arg5[%c0_25, %c2] : memref<4x258xf32, #tpu.memory_space<vmem>>, vector<4x256xf32>
    %c2_26 = arith.constant 2 : index
    %c0_27 = arith.constant 0 : index
    %29 = vector.load %arg1[%c2_26, %c0_27] : memref<3x256xf32, #tpu.memory_space<vmem>>, vector<1x256xf32>
    %30 = vector.broadcast %29 : vector<1x256xf32> to vector<4x256xf32>
    %31 = arith.mulf %28, %30 : vector<4x256xf32>
    %32 = arith.addf %27, %31 : vector<4x256xf32>
    %c0_28 = arith.constant 0 : index
    %c0_29 = arith.constant 0 : index
    %c0_30 = arith.constant 0 : index
    %33 = vector.load %arg3[%c0_28, %c0_29, %c0_30] : memref<1x4x256xf32, #tpu.memory_space<vmem>>, vector<1x4x256xf32>
    %34 = vector.shape_cast %33 : vector<1x4x256xf32> to vector<4x256xf32>
    %35 = vector.shape_cast %32 : vector<4x256xf32> to vector<1x4x256xf32>
    tpu.vector_store %arg3[%c0_28, %c0_29, %c0_30], %35 {strides = array<i32>} : memref<1x4x256xf32, #tpu.memory_space<vmem>>, vector<1x4x256xf32>,
    return
  }
  func.func @transform_0(%arg0: i32) -> (i32, i32) {
    %c0_i32 = arith.constant 0 : i32
    %c0_i32_0 = arith.constant 0 : i32
    %c0_i32_1 = arith.constant 0 : i32
    return %c0_i32, %c0_i32_0 : i32, i32
  }
  func.func @transform_1(%arg0: i32) -> (i32, i32, i32) {
    %c0_i32 = arith.constant 0 : i32
    %c0_i32_0 = arith.constant 0 : i32
    %c0_i32_1 = arith.constant 0 : i32
    return %arg0, %c0_i32, %c0_i32_0 : i32, i32, i32
  }
  func.func @transform_2(%arg0: i32) -> (i32, i32, i32) {
    %c0_i32 = arith.constant 0 : i32
    %c0_i32_0 = arith.constant 0 : i32
    %c0_i32_1 = arith.constant 0 : i32
    return %arg0, %c0_i32, %c0_i32_0 : i32, i32, i32
  }
}

</mosaic_0001>

<llo_original>
// kernel: tpu_custom_call.1
$region0: #{tpu_custom_call.1}
  #allocation0 [shape = 'u32[]', space=smem, size = 0x4, offset = 0x4, fixed_abs, tag = 'smem constant byte address 0x4 - core index']
  #allocation1 [shape = 'u32[144,128]{1,0:T(1,128)}', space=vmem, size = 0x12000, scoped, tag = 'internal scratch']
  #allocation2 [shape = 'f32[4,288]{1,0:T(4,128)}', space=vmem, size = 0x1800, scoped, tag = 'scratch operand']
  #allocation3 [shape = 'f32[4,258]{1,0:T(4,128)}', space=vmem, size = 0x1800, scoped, tag = 'scratch operand']
  %s0 = inlined_call_operand.hbm [shape: f32[3,256], index: 0, kind: input, shape index: {}]
  %s1 = inlined_call_operand.hbm [shape: f32[2,4,256], index: 1, kind: input, shape index: {}]
  %s2 = inlined_call_operand.hbm [shape: f32[2,4,256], index: 2, kind: output, shape index: {}]
  %s3 = sld [smem:[#allocation0]]
  $region49: #{tpu_custom_call.1} parent=0
    _
  %s5 = ssub.s32 1, %s3
  %s6 = scalar_select 0, %s5, %s3
  $region1: #{tpu_custom_call.1} parent=0
    #allocation4 [shape = 'u8[4096]{0}', space=vmem, size = 0x1000, scoped, tag = 'input window, operand 0, single buffered']
    #allocation5 [shape = 's32[2]{0}', space=sflag, size = 0x8, scoped, tag = 'scoped memory for tpu_custom_call.1']
    #allocation6 [shape = 's32[2]{0}', space=sflag, size = 0x8, scoped, tag = 'scoped memory for tpu_custom_call.1']
    #allocation7 [shape = 'u8[8192]{0}', space=vmem, size = 0x2000, scoped, tag = 'input window, operand 1']
    #allocation8 [shape = 's32[2]{0}', space=sflag, size = 0x8, scoped, tag = 'scoped memory for tpu_custom_call.1']
    #allocation9 [shape = 'u8[8192]{0}', space=vmem, size = 0x2000, scoped, tag = 'output window, operand 0']
    %7 = vsyncpa [#allocation5], 0
    %8 = vsyncpa [#allocation8], 0
    %s9 = scalar_lea.sflag [#allocation8], 1
    %10 = vsyncpa %s9, 0
    %11 = vsyncpa [#allocation6], 0
    %s12 = scalar_lea.sflag [#allocation6], 1
    %13 = vsyncpa %s12, 0
    loop: start=0, step=1, limit=4
    $region2: #{tpu_custom_call.1} parent=1 // loop_pre_header
      _
    $region3: #{tpu_custom_call.1} parent=1 // loop_header
      %s15 = sphi 0, %s19
      %p16 = scmp.ge.s32.totalorder %s15, 4
      %s23 = sphi 0, %s23
      %s25 = sphi 0, %s23
      %s26 = sphi 0, %s25
      %s40 = sphi 0, %s26
      %s46 = sphi 0, %s48
      %s49 = sphi 0, %s46
      %s50 = sphi 0, %s49
      %s66 = sphi 0, %s50
      %s72 = sphi 0, %s74
      %s75 = sphi 0, %s72
      %s76 = sphi 0, %s75
      %s92 = sphi 0, %s76
    $region4: #{tpu_custom_call.1} parent=1 // loop_header_branch
      %18 = sbr.rel (%p16) target = $region8
    $region5: #{tpu_custom_call.1} parent=1 // loop_body
      %s20 = ssub.s32 %s15, 1
      %s21 = ssub.s32 %s15, 2
      %s22 = sadd.s32 %s15, 1
      %s24 = sadd.s32 %s23, 1
      %p27 = scmp.eq.s32.totalorder %s15, 1
      %p28 = scmp.ne.s32.totalorder %s23, %s25
      %p29 = scmp.eq.s32.totalorder %s15, 0
      %p30 = por %p28, %p29
      %p31 = scmp.ne.s32.totalorder %s23, %s25
      %p32 = scmp.eq.s32.totalorder %s20, 1
      %p33 = por %p31, %p32
      %p34 = scmp.ne.s32.totalorder %s25, %s26
      %p35 = scmp.eq.s32.totalorder %s20, 0
      %p36 = por %p34, %p35
      %p37 = scmp.ne.s32.totalorder %s25, %s26
      %p38 = scmp.eq.s32.totalorder %s21, 1
      %p39 = por %p37, %p38
      %p41 = scmp.ne.s32.totalorder %s26, %s40
      %p42 = scmp.eq.s32.totalorder %s21, 0
      %p43 = por %p41, %p42
      %s44 = ssub.s32 %s15, %s22
      %p45 = scmp.eq.s32.totalorder %s44, 0
      %s47 = sadd.s32 %s46, 1
      %s48 = scalar_select %p45, %s46, %s47
      %p51 = pneg %p45
      %p52 = scmp.eq.s32.totalorder %s15, 1
      %p53 = por %p51, %p52
      %p54 = scmp.ne.s32.totalorder %s46, %s49
      %p55 = scmp.eq.s32.totalorder %s15, 0
      %p56 = por %p54, %p55
      %p57 = scmp.ne.s32.totalorder %s46, %s49
      %p58 = scmp.eq.s32.totalorder %s20, 1
      %p59 = por %p57, %p58
      %p60 = scmp.ne.s32.totalorder %s49, %s50
      %p61 = scmp.eq.s32.totalorder %s20, 0
      %p62 = por %p60, %p61
      %p63 = scmp.ne.s32.totalorder %s49, %s50
      %p64 = scmp.eq.s32.totalorder %s21, 1
      %p65 = por %p63, %p64
      %p67 = scmp.ne.s32.totalorder %s50, %s66
      %p68 = scmp.eq.s32.totalorder %s21, 0
      %p69 = por %p67, %p68
      %s70 = ssub.s32 %s15, %s22
      %p71 = scmp.eq.s32.totalorder %s70, 0
      %s73 = sadd.s32 %s72, 1
      %s74 = scalar_select %p71, %s72, %s73
      %p77 = pneg %p71
      %p78 = scmp.eq.s32.totalorder %s15, 1
      %p79 = por %p77, %p78
      %p80 = scmp.ne.s32.totalorder %s72, %s75
      %p81 = scmp.eq.s32.totalorder %s15, 0
      %p82 = por %p80, %p81
      %p83 = scmp.ne.s32.totalorder %s72, %s75
      %p84 = scmp.eq.s32.totalorder %s20, 1
      %p85 = por %p83, %p84
      %p86 = scmp.ne.s32.totalorder %s75, %s76
      %p87 = scmp.eq.s32.totalorder %s20, 0
      %p88 = por %p86, %p87
      %p89 = scmp.ne.s32.totalorder %s75, %s76
      %p90 = scmp.eq.s32.totalorder %s21, 1
      %p91 = por %p89, %p90
      %p93 = scmp.ne.s32.totalorder %s76, %s92
      %p94 = scmp.eq.s32.totalorder %s21, 0
      %p95 = por %p93, %p94
      %p96 = scmp.le.s32.totalorder 1, %s15
      %p97 = scmp.lt.s32.totalorder %s15, 3
      %p98 = pnand %p96, %p97
      %p99 = pneg %p98
      // Predicated region
      $region9: #{tpu_custom_call.1} parent=5 // pred_check
        _
      $region10: #{tpu_custom_call.1} parent=5 // pred_check_branch
        %101 = sbr.rel (%p98) target = $region12
      $region11: #{tpu_custom_call.1} parent=5 // pred_region
        %s102 = ssub.s32 %s15, 1
        // Predicated region
        $region13: #{tpu_custom_call.1} parent=11 // pred_check
          %p103 = pneg %p36
        $region14: #{tpu_custom_call.1} parent=11 // pred_check_branch
          %105 = sbr.rel (%p103) target = $region16
        $region15: #{tpu_custom_call.1} parent=11 // pred_region
          %s107 = ssub.s32 128, 128
          %108 = vsyncadd [#allocation5], %s107
          %s110 = sshll.u32 [#allocation4], 4
          %s111 = int_to_ptr.vmem [resolvable:$true] %s110
          %113 = dma.hbm_to_vmem [thread:$0]  %s0, 128, %s111, [#allocation5]
        $region16: #{tpu_custom_call.1} parent=11 // pred_fallthru
          _
      $region12: #{tpu_custom_call.1} parent=5 // pred_fallthru
        _
      %p114 = scmp.lt.s32.totalorder %s15, 2
      // Predicated region
      $region17: #{tpu_custom_call.1} parent=5 // pred_check
        %p115 = pneg %p114
      $region18: #{tpu_custom_call.1} parent=5 // pred_check_branch
        %117 = sbr.rel (%p115) target = $region20
      $region19: #{tpu_custom_call.1} parent=5 // pred_region
        // Predicated region
        $region21: #{tpu_custom_call.1} parent=19 // pred_check
          %p118 = pneg %p56
        $region22: #{tpu_custom_call.1} parent=19 // pred_check_branch
          %120 = sbr.rel (%p118) target = $region24
        $region23: #{tpu_custom_call.1} parent=19 // pred_region
          %s121 = sand.u32 %s46, 1
          %s122 = scalar_lea.sflag [#allocation8], %s121
          %s123 = sand.u32 %s46, 1
          %s124 = smul.addr %s123, 8
          %s125 = scalar_lea.vmem [#allocation7], %s124
          %s127 = ssub.s32 128, 128
          %128 = vsyncadd %s122, %s127
          %s129 = smul.addr %s15, 2
          %s130 = smul.addr %s129, 64
          %s131 = scalar_lea.hbm %s1, %s130
          %s133 = sshll.u32 %s125, 4
          %s134 = int_to_ptr.vmem [resolvable:$true] %s133
          %136 = dma.hbm_to_vmem [thread:$0]  %s131, 128, %s134, %s122
        $region24: #{tpu_custom_call.1} parent=19 // pred_fallthru
          _
      $region20: #{tpu_custom_call.1} parent=5 // pred_fallthru
        _
      %p137 = scmp.le.s32.totalorder 1, %s15
      %p138 = scmp.lt.s32.totalorder %s15, 3
      %p139 = pnand %p137, %p138
      %p140 = pneg %p139
      // Predicated region
      $region25: #{tpu_custom_call.1} parent=5 // pred_check
        _
      $region26: #{tpu_custom_call.1} parent=5 // pred_check_branch
        %142 = sbr.rel (%p139) target = $region28
      $region27: #{tpu_custom_call.1} parent=5 // pred_region
        %s143 = ssub.s32 %s15, 1
        // Predicated region
        $region29: #{tpu_custom_call.1} parent=27 // pred_check
          %p144 = pneg %p36
        $region30: #{tpu_custom_call.1} parent=27 // pred_check_branch
          %146 = sbr.rel (%p144) target = $region32
        $region31: #{tpu_custom_call.1} parent=27 // pred_region
          %147 = dma.done [#allocation5], 128
        $region32: #{tpu_custom_call.1} parent=27 // pred_fallthru
          _
        %s148 = sand.u32 %s49, 1
        %s149 = scalar_lea.sflag [#allocation8], %s148
        %s150 = sand.u32 %s49, 1
        %s151 = smul.addr %s150, 8
        %s152 = scalar_lea.vmem [#allocation7], %s151
        // Predicated region
        $region33: #{tpu_custom_call.1} parent=27 // pred_check
          %p153 = pneg %p62
        $region34: #{tpu_custom_call.1} parent=27 // pred_check_branch
          %155 = sbr.rel (%p153) target = $region36
        $region35: #{tpu_custom_call.1} parent=27 // pred_region
          %156 = dma.done %s149, 128
        $region36: #{tpu_custom_call.1} parent=27 // pred_fallthru
          _
        %p157 = pneg %p36
        %p158 = pneg %p33
        %s159 = sand.u32 %s49, 1
        %s160 = scalar_lea.sflag [#allocation8], %s159
        %s161 = sand.u32 %s49, 1
        %s162 = smul.addr %s161, 8
        %s163 = scalar_lea.vmem [#allocation7], %s162
        %p164 = pneg %p62
        %p165 = pneg %p59
        %p166 = pneg %p88
        %p167 = pneg %p85
        %s168 = sand.u32 %s75, 1
        %s169 = scalar_lea.sflag [#allocation6], %s168
        %s170 = sand.u32 %s75, 1
        %s171 = smul.addr %s170, 8
        %s172 = scalar_lea.vmem [#allocation9], %s171
        %173 = vst [vmem:[#allocation2] sm:$0xff] 0.0
        %vm174 = vcmask 257024
        %175 = vst.msk [vmem:[#allocation2 + $0x8] sm:$0xf] %vm174, 0.0
        %v176 = vld [vmem:[%s152] sm:$0xff]
        %178 = vrot.lane.b32.xlu0 %v176, 16
        %v179 = vpop.permute.xlu0 %178
        %v180 = vrot.slane %v179, 4
        %vm181 = vcmask 130048
        %v182 = vsel %vm181, %v180, %v179
        %vm185 = vcmask 1043584
        %vm186 = vcmask 1047556
        %vm187 = vmor %vm186, %vm185
        %188 = vst.msk [vmem:[#allocation2] sm:$0xff] %vm187, %v182
        %vm189 = vcmask 125952
        %190 = vst.msk [vmem:[#allocation2 + $0x8] sm:$0xf] %vm189, %v180
        %v191 = vld [vmem:[#allocation2] sm:$0xff]
        %v192 = vmul.f32 %v191, 0.27406862
        %v193 = vld [vmem:[#allocation2 + $0x8] sm:$0xf]
        %v194 = vmul.f32 %v191, 0.45186275
        %v195 = vmul.f32 %v193, 0.45186275
        %198 = vrot.lane.b32.xlu0 %v194, 112
        %v199 = vpop.permute.xlu0 %198
        %200 = vrot.lane.b32.xlu0 %v195, 112
        %v201 = vpop.permute.xlu0 %200
        %v202 = vrot.slane %v199, 4
        %v203 = vrot.slane %v201, 4
        %vm204 = vcmask 1043456
        %v205 = vsel %vm204, %v202, %v203
        %vm206 = vcmask 916480
        %v207 = vsel %vm206, %v199, %v205
        %v209 = vadd.f32 %v192, %v207
        %v210 = vmul.f32 %v193, 0.27406862
        %213 = vrot.lane.b32.xlu0 %v192, 96
        %v214 = vpop.permute.xlu0 %213
        %215 = vrot.lane.b32.xlu0 %v210, 96
        %v216 = vpop.permute.xlu0 %215
        %v217 = vrot.slane %v214, 4
        %v218 = vrot.slane %v216, 4
        %v219 = vsel %vm204, %v217, %v218
        %vm220 = vcmask 785408
        %v221 = vsel %vm220, %v214, %v219
        %v223 = vadd.f32 %v209, %v221
        %224 = vst [vmem:[#allocation3] sm:$0xff] 0.0
        %vm225 = vcmask 11264
        %226 = vst.msk [vmem:[#allocation3 + $0x8] sm:$0xf] %vm225, 0.0
        %228 = vrot.lane.b32.xlu0 %v223, 1
        %v229 = vpop.permute.xlu0 %228
        %v230 = vrot.slane %v229, 4
        %vm231 = vcmask 7168
        %v232 = vsel %vm231, %v230, %v229
        %vm235 = vcmask 1043464
        %vm236 = vmor %vm186, %vm235
        %237 = vst.msk [vmem:[#allocation3] sm:$0xff] %vm236, %v232
        %vm238 = vcmask 3072
        %239 = vst.msk [vmem:[#allocation3 + $0x8] sm:$0xf] %vm238, %v230
        %v240 = vld [vmem:[#allocation3] sm:$0xff]
        %v241 = vld [vmem:[#allocation4] ss:$4 sm:$0x3]
        %v243 = vlaneseq
        %v244 = vshrl.u32 %v243, 7
        %v245 = vsub.s32 0, %v244
        %v246 = vrot.slane %v241, %v245
        %v247 = vlaneseq
        %v248 = vshrl.u32 %v247, 7
        %v249 = vsub.s32 1, %v248
        %v250 = vrot.slane %v241, %v249
        %v251 = vcombine.low %v246, %v250
        %v253 = vmul.f32 %v240, %v251
        %v254 = vld [vmem:[#allocation3 + $0x8] sm:$0xf]
        %s255 = scalar_lea.vmem [#allocation4], 1
        %v256 = vld [vmem:[%s255] ss:$4 sm:$0x3]
        %v258 = vlaneseq
        %v259 = vshrl.u32 %v258, 7
        %v260 = vsub.s32 0, %v259
        %v261 = vrot.slane %v256, %v260
        %v262 = vlaneseq
        %v263 = vshrl.u32 %v262, 7
        %v264 = vsub.s32 1, %v263
        %v265 = vrot.slane %v256, %v264
        %v266 = vcombine.low %v261, %v265
        %267 = vrot.lane.b32.xlu0 %v266, 1
        %v268 = vpop.permute.xlu0 %267
        %v269 = vrot.slane %v268, 4
        %v270 = vsel %vm231, %v269, %v268
        %v273 = vmul.f32 %v240, %v270
        %v274 = vmul.f32 %v254, %v269
        %277 = vrot.lane.b32.xlu0 %v273, 127
        %v278 = vpop.permute.xlu0 %277
        %279 = vrot.lane.b32.xlu0 %v274, 127
        %v280 = vpop.permute.xlu0 %279
        %v281 = vrot.slane %v278, 4
        %v282 = vrot.slane %v280, 4
        %v283 = vsel %vm204, %v281, %v282
        %vm284 = vcmask 1039360
        %v285 = vsel %vm284, %v278, %v283
        %v287 = vadd.f32 %v253, %v285
        %s288 = scalar_lea.vmem [#allocation4], 2
        %v289 = vld [vmem:[%s288] ss:$4 sm:$0x3]
        %v291 = vlaneseq
        %v292 = vshrl.u32 %v291, 7
        %v293 = vsub.s32 0, %v292
        %v294 = vrot.slane %v289, %v293
        %v295 = vlaneseq
        %v296 = vshrl.u32 %v295, 7
        %v297 = vsub.s32 1, %v296
        %v298 = vrot.slane %v289, %v297
        %v299 = vcombine.low %v294, %v298
        %300 = vrot.lane.b32.xlu0 %v299, 2
        %v301 = vpop.permute.xlu0 %300
        %v302 = vrot.slane %v301, 4
        %vm303 = vcmask 15360
        %v304 = vsel %vm303, %v302, %v301
        %v307 = vmul.f32 %v240, %v304
        %v308 = vmul.f32 %v254, %v302
        %311 = vrot.lane.b32.xlu0 %v307, 126
        %v312 = vpop.permute.xlu0 %311
        %313 = vrot.lane.b32.xlu0 %v308, 126
        %v314 = vpop.permute.xlu0 %313
        %v315 = vrot.slane %v312, 4
        %v316 = vrot.slane %v314, 4
        %v317 = vsel %vm204, %v315, %v316
        %vm318 = vcmask 1031168
        %v319 = vsel %vm318, %v312, %v317
        %v321 = vadd.f32 %v287, %v319
        %322 = vst [vmem:[%s172] sm:$0xff] %v321
        %s323 = sand.u32 %s75, 1
        %s324 = scalar_lea.sflag [#allocation6], %s323
        %s325 = sand.u32 %s75, 1
        %s326 = smul.addr %s325, 8
        %s327 = scalar_lea.vmem [#allocation9], %s326
        // Predicated region
        $region37: #{tpu_custom_call.1} parent=27 // pred_check
          %p328 = pneg %p85
        $region38: #{tpu_custom_call.1} parent=27 // pred_check_branch
          %330 = sbr.rel (%p328) target = $region40
        $region39: #{tpu_custom_call.1} parent=27 // pred_region
          %s332 = ssub.s32 128, 128
          %333 = vsyncadd %s324, %s332
          %s334 = smul.addr %s20, 2
          %s335 = smul.addr %s334, 64
          %s336 = scalar_lea.hbm %s2, %s335
          %s338 = sshll.u32 %s327, 4
          %s339 = int_to_ptr.vmem [resolvable:$true] %s338
          %341 = dma.vmem_to_hbm [thread:$0]  %s339, 128, %s336, %s324
        $region40: #{tpu_custom_call.1} parent=27 // pred_fallthru
          _
      $region28: #{tpu_custom_call.1} parent=5 // pred_fallthru
        _
      %p342 = scmp.le.s32.totalorder 2, %s15
      // Predicated region
      $region41: #{tpu_custom_call.1} parent=5 // pred_check
        %p343 = pneg %p342
      $region42: #{tpu_custom_call.1} parent=5 // pred_check_branch
        %345 = sbr.rel (%p343) target = $region44
      $region43: #{tpu_custom_call.1} parent=5 // pred_region
        %s346 = ssub.s32 %s15, 2
        // Predicated region
        $region45: #{tpu_custom_call.1} parent=43 // pred_check
          %p347 = pneg %p91
        $region46: #{tpu_custom_call.1} parent=43 // pred_check_branch
          %349 = sbr.rel (%p347) target = $region48
        $region47: #{tpu_custom_call.1} parent=43 // pred_region
          %s350 = sand.u32 %s76, 1
          %s351 = scalar_lea.sflag [#allocation6], %s350
          %s352 = sand.u32 %s76, 1
          %s353 = smul.addr %s352, 8
          %s354 = scalar_lea.vmem [#allocation9], %s353
          %355 = dma.done %s351, 128
        $region48: #{tpu_custom_call.1} parent=43 // pred_fallthru
          _
      $region44: #{tpu_custom_call.1} parent=5 // pred_fallthru
        _
    $region6: #{tpu_custom_call.1} parent=1 // loop_footer
      %s19 = sadd.s32 1, %s15
    $region7: #{tpu_custom_call.1} parent=1 // loop_footer_branch
      %14 = sbr.rel target = $region3
    $region8: #{tpu_custom_call.1} parent=1 // loop_exit
      _
    %356 = vsyncpa [#allocation5], 1
    %s357 = scalar_lea.sflag [#allocation5], 1
    %358 = vsyncpa %s357, 1
    %359 = vsyncpa [#allocation8], 1
    %s360 = scalar_lea.sflag [#allocation8], 1
    %361 = vsyncpa %s360, 1
    %362 = vsyncpa [#allocation6], 1
    %s363 = scalar_lea.sflag [#allocation6], 1
    %364 = vsyncpa %s363, 1

</llo_original>
